<compile_context>
chip_gen: v6e
topology: v6e:2x2x1
jax: 0.10.0
libtpu: 0.0.40
codegen_flags: <defaults>
</compile_context>

<pallas_src>
import jax
import jax.numpy as jnp
from jax.experimental import pallas as pl
from jax.experimental.pallas import tpu as pltpu

STATE_DIM = 8
ACTION_DIM = 4
HIDDEN1 = 128
HIDDEN2 = 64


def _round_up(n, m):
    return ((n + m - 1) // m) * m


# --------------------------------------------------------------------------- #
# Kernel: 3 bf16 matmuls (f32 accumulate), fused heads + fused dueling combine
# --------------------------------------------------------------------------- #
def dueling_q_kernel(x_ref, w1_ref, b1_ref, wh_ref, bh_ref, wo_ref, bo_ref, out_ref):
    x = x_ref[...]                                                    # (TB, S) bf16

    # Shared feature layer: Linear(S, 128) + ReLU
    h = jnp.dot(x, w1_ref[...], preferred_element_type=jnp.float32) + b1_ref[...]
    h = jnp.maximum(h, 0.0).astype(jnp.bfloat16)                      # (TB, 128)

    # Fused value+advantage hidden layer: Linear(128, 128) + ReLU -> [vh | ah]
    f = jnp.dot(h, wh_ref[...], preferred_element_type=jnp.float32) + bh_ref[...]
    f = jnp.maximum(f, 0.0).astype(jnp.bfloat16)                      # (TB, 128)

    # Fused dueling head: value + adv - mean(adv) folded into the (128, A) weights.
    out_ref[...] = (
        jnp.dot(f, wo_ref[...], preferred_element_type=jnp.float32) + bo_ref[...]
    )                                                                 # (TB, A) f32


# --------------------------------------------------------------------------- #
# Host-side weight fusion (done once, outside the kernel)
# --------------------------------------------------------------------------- #
def fuse_params(p, action_dim=ACTION_DIM):
    """Concatenate the two streams and fold the dueling mean into the weights.

    All fusion arithmetic is done in f32; only the final matmul weights are cast
    to bf16 (biases stay f32 and are added to the f32 accumulators).
    """
    w_heads = jnp.concatenate([p["wv1"], p["wa1"]], axis=1)           # (128, 128)
    b_heads = jnp.concatenate([p["bv1"], p["ba1"]], axis=1)           # (1, 128)

    wa2_c = p["wa2"] - p["wa2"].mean(axis=1, keepdims=True)           # (64, A)
    ba2_c = p["ba2"] - p["ba2"].mean()                                # (1, A)
    w_out = jnp.concatenate(
        [jnp.tile(p["wv2"], (1, action_dim)), wa2_c], axis=0)         # (128, A)
    b_out = p["bv2"] + ba2_c                                          # (1, A)

    return dict(
        w1=p["w1"].astype(jnp.bfloat16), b1=p["b1"],
        w_heads=w_heads.astype(jnp.bfloat16), b_heads=b_heads,
        w_out=w_out.astype(jnp.bfloat16), b_out=b_out,
    )


# --------------------------------------------------------------------------- #
# Wrapper: batch-gridded pallas_call
# --------------------------------------------------------------------------- #
def dueling_q_forward(x, fused, *, tile_b=2048):
    """x: (B, STATE_DIM) float32. fused: output of fuse_params()."""
    B, S = x.shape
    A = fused["w_out"].shape[1]

    # Balanced batch tiling: pick the number of tiles, then split B evenly and
    # round each tile up to a multiple of 16 (bf16 sublane packing).
    ntiles = max(pl.cdiv(B, tile_b), 1)
    if B >= 512:
        ntiles = max(ntiles, 2)       # v7x: keep both TensorCores busy (parallel axis)
    tb = _round_up(pl.cdiv(B, ntiles), 16)
    Bp = ntiles * tb

    x = x.astype(jnp.bfloat16)        # halve the x HBM->VMEM DMA bytes
    if Bp != B:
        x = jnp.pad(x, ((0, Bp - B), (0, 0)))

    weight_spec = lambda shape: pl.BlockSpec(shape, lambda i: (0, 0))

    weight_bytes = (S * HIDDEN1 + HIDDEN1 * HIDDEN1 + HIDDEN1 * A) * 2 \
                   + (HIDDEN1 + HIDDEN1 + A) * 4
    cost = pl.CostEstimate(
        flops=2 * Bp * (S * HIDDEN1 + HIDDEN1 * HIDDEN1 + HIDDEN1 * A),
        transcendentals=0,
        bytes_accessed=Bp * S * 2 + Bp * A * 4 + weight_bytes,
    )

    out = pl.pallas_call(
        dueling_q_kernel,
        out_shape=jax.ShapeDtypeStruct((Bp, A), jnp.float32),
        grid=(ntiles,),
        in_specs=[
            pl.BlockSpec((tb, S), lambda i: (i, 0)),      # x: tiled over batch
            weight_spec((S, HIDDEN1)),                    # w1      (resident, bf16)
            weight_spec((1, HIDDEN1)),                    # b1      (f32)
            weight_spec((HIDDEN1, HIDDEN1)),              # w_heads (resident, bf16)
            weight_spec((1, HIDDEN1)),                    # b_heads (f32)
            weight_spec((HIDDEN1, A)),                    # w_out   (resident, bf16)
            weight_spec((1, A)),                          # b_out   (f32)
        ],
        out_specs=pl.BlockSpec((tb, A), lambda i: (i, 0)),
        compiler_params=pltpu.CompilerParams(
            dimension_semantics=("parallel",),            # v7x: shard tiles across both TCs
        ),
        cost_estimate=cost,
    )(x, fused["w1"], fused["b1"], fused["w_heads"], fused["b_heads"],
      fused["w_out"], fused["b_out"])

    return out[:B]


# --------------------------------------------------------------------------- #
# Init + references
# --------------------------------------------------------------------------- #
def init_params(key, state_dim, action_dim):
    """PyTorch-Linear-style init, weights stored transposed (in, out), biases (1, out)."""
    def linear(k, fan_in, fan_out):
        kw, kb = jax.random.split(k)
        bound = 1.0 / jnp.sqrt(fan_in)
        w = jax.random.uniform(kw, (fan_in, fan_out), jnp.float32, -bound, bound)
        b = jax.random.uniform(kb, (1, fan_out), jnp.float32, -bound, bound)
        return w, b

    k1, k2, k3, k4, k5 = jax.random.split(key, 5)
    w1, b1 = linear(k1, state_dim, HIDDEN1)
    wv1, bv1 = linear(k2, HIDDEN1, HIDDEN2)
    wv2, bv2 = linear(k3, HIDDEN2, 1)
    wa1, ba1 = linear(k4, HIDDEN1, HIDDEN2)
    wa2, ba2 = linear(k5, HIDDEN2, action_dim)
    return dict(w1=w1, b1=b1, wv1=wv1, bv1=bv1, wv2=wv2, bv2=bv2,
                wa1=wa1, ba1=ba1, wa2=wa2, ba2=ba2)


def reference_forward(x, p):
    """Unfused pure-JAX f32 reference (mirrors QNetwork_Dueling.forward)."""
    h = jnp.maximum(x @ p["w1"] + p["b1"], 0.0)
    v = jnp.maximum(h @ p["wv1"] + p["bv1"], 0.0) @ p["wv2"] + p["bv2"]
    a = jnp.maximum(h @ p["wa1"] + p["ba1"], 0.0) @ p["wa2"] + p["ba2"]
    return v + a - a.mean(axis=1, keepdims=True)


def reference_forward_bf16(x, fused):
    """Emulates the kernel's fused bf16-input / f32-accumulate math exactly."""
    xb = x.astype(jnp.bfloat16)
    h = jnp.maximum(
        jnp.dot(xb, fused["w1"], preferred_element_type=jnp.float32) + fused["b1"], 0.0
    ).astype(jnp.bfloat16)
    f = jnp.maximum(
        jnp.dot(h, fused["w_heads"], preferred_element_type=jnp.float32) + fused["b_heads"], 0.0
    ).astype(jnp.bfloat16)
    return jnp.dot(f, fused["w_out"], preferred_element_type=jnp.float32) + fused["b_out"]


if __name__ == "__main__":
    key = jax.random.PRNGKey(0)
    kx, kx2, kp = jax.random.split(key, 3)

    params = init_params(kp, STATE_DIM, ACTION_DIM)
    fused = fuse_params(params, ACTION_DIM)

    # Small demo batch (matches typical per-step RL inference shape).
    batch = 2
    x = jax.random.normal(kx, (batch, STATE_DIM), dtype=jnp.float32)
    out = jax.block_until_ready(dueling_q_forward(x, fused))
    assert out.shape == (batch, ACTION_DIM)
    # Tight check vs a reference using the same bf16/f32-accum math as the kernel.
    assert jnp.allclose(out, reference_forward_bf16(x, fused), atol=2e-3, rtol=2e-3)
    # Semantics check vs the unfused f32 module reference (loose: bf16 matmul inputs).
    assert jnp.allclose(out, reference_forward(x, params), atol=2.5e-1, rtol=0)

    # Larger, non-multiple-of-tile batch to exercise padding + the multi-tile grid.
    batch2 = 1000
    x2 = jax.random.normal(kx2, (batch2, STATE_DIM), dtype=jnp.float32)
    out2 = jax.block_until_ready(dueling_q_forward(x2, fused, tile_b=2048))
    assert out2.shape == (batch2, ACTION_DIM)
    assert jnp.allclose(out2, reference_forward_bf16(x2, fused), atol=2e-3, rtol=2e-3)
    assert jnp.allclose(out2, reference_forward(x2, params), atol=2.5e-1, rtol=0)

    # TODO(synk): optional int8 weight quantization (v5e/v6e only) and fused argmax
    # output for action selection were left out to keep module forward semantics.

    print("KERNEL_OK")
</pallas_src>

<mosaic_0001>
module attributes {stable_mosaic.version = 11 : i64} {
  func.func @dueling_q_kernel(%arg0: i32, %arg1: memref<16x8xbf16, #tpu.memory_space<vmem>>, %arg2: memref<8x128xbf16, #tpu.memory_space<vmem>>, %arg3: memref<1x128xf32, #tpu.memory_space<vmem>>, %arg4: memref<128x128xbf16, #tpu.memory_space<vmem>>, %arg5: memref<1x128xf32, #tpu.memory_space<vmem>>, %arg6: memref<128x4xbf16, #tpu.memory_space<vmem>>, %arg7: memref<1x4xf32, #tpu.memory_space<vmem>>, %arg8: memref<16x4xf32, #tpu.memory_space<vmem>>) attributes {dimension_semantics = [#tpu.dimension_semantics<parallel>], iteration_bounds = array<i64: 1>, scalar_prefetch = 0 : i64, scratch_operands = 0 : i64, tpu.core_type = #tpu.core_type<tc>, window_params = [{transform_indices = @transform_0, window_bounds = array<i64: 16, 8>}, {pipeline_mode = #tpu.pipeline_mode<synchronous>, transform_indices = @transform_1, window_bounds = array<i64: 8, 128>}, {pipeline_mode = #tpu.pipeline_mode<synchronous>, transform_indices = @transform_2, window_bounds = array<i64: 1, 128>}, {pipeline_mode = #tpu.pipeline_mode<synchronous>, transform_indices = @transform_3, window_bounds = array<i64: 128, 128>}, {pipeline_mode = #tpu.pipeline_mode<synchronous>, transform_indices = @transform_4, window_bounds = array<i64: 1, 128>}, {pipeline_mode = #tpu.pipeline_mode<synchronous>, transform_indices = @transform_5, window_bounds = array<i64: 128, 4>}, {pipeline_mode = #tpu.pipeline_mode<synchronous>, transform_indices = @transform_6, window_bounds = array<i64: 1, 4>}, {transform_indices = @transform_7, window_bounds = array<i64: 16, 4>}]} {
    %c0 = arith.constant 0 : index
    %c0_0 = arith.constant 0 : index
    %0 = vector.load %arg1[%c0, %c0_0] : memref<16x8xbf16, #tpu.memory_space<vmem>>, vector<16x8xbf16>
    %c0_1 = arith.constant 0 : index
    %c0_2 = arith.constant 0 : index
    %1 = vector.load %arg2[%c0_1, %c0_2] : memref<8x128xbf16, #tpu.memory_space<vmem>>, vector<8x128xbf16>
    %cst = arith.constant dense<0.000000e+00> : vector<16x128xf32>
    %2 = tpu.matmul %0, %1, %cst {dimension_numbers = #tpu.dot_dimension_numbers<[1], [0], [0], [1], [0, 0, 1, 1], [], []>} : vector<16x8xbf16>, vector<8x128xbf16>, vector<16x128xf32> -> vector<16x128xf32>
    %c0_3 = arith.constant 0 : index
    %c0_4 = arith.constant 0 : index
    %3 = vector.load %arg3[%c0_3, %c0_4] : memref<1x128xf32, #tpu.memory_space<vmem>>, vector<1x128xf32>
    %4 = vector.broadcast %3 : vector<1x128xf32> to vector<16x128xf32>
    %5 = arith.addf %2, %4 : vector<16x128xf32>
    %cst_5 = arith.constant 0.000000e+00 : f32
    %6 = vector.broadcast %cst_5 : f32 to vector<16x128xf32>
    %7 = arith.maximumf %5, %6 : vector<16x128xf32>
    %8 = arith.truncf %7 : vector<16x128xf32> to vector<16x128xbf16>
    %c0_6 = arith.constant 0 : index
    %c0_7 = arith.constant 0 : index
    %9 = vector.load %arg4[%c0_6, %c0_7] : memref<128x128xbf16, #tpu.memory_space<vmem>>, vector<128x128xbf16>
    %cst_8 = arith.constant dense<0.000000e+00> : vector<16x128xf32>
    %10 = tpu.matmul %8, %9, %cst_8 {dimension_numbers = #tpu.dot_dimension_numbers<[1], [0], [0], [1], [0, 0, 1, 1], [], []>} : vector<16x128xbf16>, vector<128x128xbf16>, vector<16x128xf32> -> vector<16x128xf32>
    %c0_9 = arith.constant 0 : index
    %c0_10 = arith.constant 0 : index
    %11 = vector.load %arg5[%c0_9, %c0_10] : memref<1x128xf32, #tpu.memory_space<vmem>>, vector<1x128xf32>
    %12 = vector.broadcast %11 : vector<1x128xf32> to vector<16x128xf32>
    %13 = arith.addf %10, %12 : vector<16x128xf32>
    %cst_11 = arith.constant 0.000000e+00 : f32
    %14 = vector.broadcast %cst_11 : f32 to vector<16x128xf32>
    %15 = arith.maximumf %13, %14 : vector<16x128xf32>
    %16 = arith.truncf %15 : vector<16x128xf32> to vector<16x128xbf16>
    %c0_12 = arith.constant 0 : index
    %c0_13 = arith.constant 0 : index
    %17 = vector.load %arg6[%c0_12, %c0_13] : memref<128x4xbf16, #tpu.memory_space<vmem>>, vector<128x4xbf16>
    %cst_14 = arith.constant dense<0.000000e+00> : vector<16x4xf32>
    %18 = tpu.matmul %16, %17, %cst_14 {dimension_numbers = #tpu.dot_dimension_numbers<[1], [0], [0], [1], [0, 0, 1, 1], [], []>} : vector<16x128xbf16>, vector<128x4xbf16>, vector<16x4xf32> -> vector<16x4xf32>
    %c0_15 = arith.constant 0 : index
    %c0_16 = arith.constant 0 : index
    %19 = vector.load %arg7[%c0_15, %c0_16] : memref<1x4xf32, #tpu.memory_space<vmem>>, vector<1x4xf32>
    %20 = vector.broadcast %19 : vector<1x4xf32> to vector<16x4xf32>
    %21 = arith.addf %18, %20 : vector<16x4xf32>
    %c0_17 = arith.constant 0 : index
    %c0_18 = arith.constant 0 : index
    %22 = vector.load %arg8[%c0_17, %c0_18] : memref<16x4xf32, #tpu.memory_space<vmem>>, vector<16x4xf32>
    tpu.vector_store %arg8[%c0_17, %c0_18], %21 {strides = array<i32>} : memref<16x4xf32, #tpu.memory_space<vmem>>, vector<16x4xf32>,
    return
  }
  func.func @transform_0(%arg0: i32) -> (i32, i32) {
    %c0_i32 = arith.constant 0 : i32
    %c0_i32_0 = arith.constant 0 : i32
    return %arg0, %c0_i32 : i32, i32
  }
  func.func @transform_1(%arg0: i32) -> (i32, i32) {
    %c0_i32 = arith.constant 0 : i32
    %c0_i32_0 = arith.constant 0 : i32
    %c0_i32_1 = arith.constant 0 : i32
    return %c0_i32, %c0_i32_0 : i32, i32
  }
  func.func @transform_2(%arg0: i32) -> (i32, i32) {
    %c0_i32 = arith.constant 0 : i32
    %c0_i32_0 = arith.constant 0 : i32
    %c0_i32_1 = arith.constant 0 : i32
    return %c0_i32, %c0_i32_0 : i32, i32
  }
  func.func @transform_3(%arg0: i32) -> (i32, i32) {
    %c0_i32 = arith.constant 0 : i32
    %c0_i32_0 = arith.constant 0 : i32
    %c0_i32_1 = arith.constant 0 : i32
    return %c0_i32, %c0_i32_0 : i32, i32
  }
  func.func @transform_4(%arg0: i32) -> (i32, i32) {
    %c0_i32 = arith.constant 0 : i32
    %c0_i32_0 = arith.constant 0 : i32
    %c0_i32_1 = arith.constant 0 : i32
    return %c0_i32, %c0_i32_0 : i32, i32
  }
  func.func @transform_5(%arg0: i32) -> (i32, i32) {
    %c0_i32 = arith.constant 0 : i32
    %c0_i32_0 = arith.constant 0 : i32
    %c0_i32_1 = arith.constant 0 : i32
    return %c0_i32, %c0_i32_0 : i32, i32
  }
  func.func @transform_6(%arg0: i32) -> (i32, i32) {
    %c0_i32 = arith.constant 0 : i32
    %c0_i32_0 = arith.constant 0 : i32
    %c0_i32_1 = arith.constant 0 : i32
    return %c0_i32, %c0_i32_0 : i32, i32
  }
  func.func @transform_7(%arg0: i32) -> (i32, i32) {
    %c0_i32 = arith.constant 0 : i32
    %c0_i32_0 = arith.constant 0 : i32
    return %arg0, %c0_i32 : i32, i32
  }
}

</mosaic_0001>

<llo_original>
// kernel: tpu_custom_call.1
$region0: #{tpu_custom_call.1}
  #allocation0 [shape = 'u32[]', space=smem, size = 0x4, offset = 0x4, fixed_abs, tag = 'smem constant byte address 0x4 - core index']
  #allocation1 [shape = 'u32[144,128]{1,0:T(1,128)}', space=vmem, size = 0x12000, scoped, tag = 'internal scratch']
  %s0 = inlined_call_operand.vmem [shape: bf16[16,8], index: 0, kind: input, shape index: {}]
  %s1 = inlined_call_operand.vmem [shape: bf16[8,128], index: 1, kind: input, shape index: {}]
  %s2 = inlined_call_operand.vmem [shape: f32[1,128], index: 2, kind: input, shape index: {}]
  %s3 = inlined_call_operand.vmem [shape: bf16[128,128], index: 3, kind: input, shape index: {}]
  %s4 = inlined_call_operand.vmem [shape: f32[1,128], index: 4, kind: input, shape index: {}]
  %s5 = inlined_call_operand.vmem [shape: bf16[128,4], index: 5, kind: input, shape index: {}]
  %s6 = inlined_call_operand.vmem [shape: f32[1,4], index: 6, kind: input, shape index: {}]
  %s7 = inlined_call_operand.vmem [shape: f32[16,4], index: 7, kind: output, shape index: {}]
  %s8 = sld [smem:[#allocation0]]
  $region38: #{tpu_custom_call.1} parent=0
    _
  %s10 = ssub.s32 1, %s8
  %s11 = scalar_select 0, %s10, %s8
  // Predicated region
  $region2: #{tpu_custom_call.1} parent=0 // pred_check
    _
  $region3: #{tpu_custom_call.1} parent=0 // pred_check_branch
    %13 = sbr.rel (0) target = $region5
  $region4: #{tpu_custom_call.1} parent=0 // pred_region
    _
  $region5: #{tpu_custom_call.1} parent=0 // pred_fallthru
    _
  // Predicated region
  $region6: #{tpu_custom_call.1} parent=0 // pred_check
    _
  $region7: #{tpu_custom_call.1} parent=0 // pred_check_branch
    %15 = sbr.rel (0) target = $region9
  $region8: #{tpu_custom_call.1} parent=0 // pred_region
    _
  $region9: #{tpu_custom_call.1} parent=0 // pred_fallthru
    _
  // Predicated region
  $region10: #{tpu_custom_call.1} parent=0 // pred_check
    _
  $region11: #{tpu_custom_call.1} parent=0 // pred_check_branch
    %17 = sbr.rel (0) target = $region13
  $region12: #{tpu_custom_call.1} parent=0 // pred_region
    _
  $region13: #{tpu_custom_call.1} parent=0 // pred_fallthru
    _
  // Predicated region
  $region14: #{tpu_custom_call.1} parent=0 // pred_check
    _
  $region15: #{tpu_custom_call.1} parent=0 // pred_check_branch
    %19 = sbr.rel (0) target = $region17
  $region16: #{tpu_custom_call.1} parent=0 // pred_region
    _
  $region17: #{tpu_custom_call.1} parent=0 // pred_fallthru
    _
  // Predicated region
  $region18: #{tpu_custom_call.1} parent=0 // pred_check
    _
  $region19: #{tpu_custom_call.1} parent=0 // pred_check_branch
    %21 = sbr.rel (0) target = $region21
  $region20: #{tpu_custom_call.1} parent=0 // pred_region
    _
  $region21: #{tpu_custom_call.1} parent=0 // pred_fallthru
    _
  // Predicated region
  $region22: #{tpu_custom_call.1} parent=0 // pred_check
    _
  $region23: #{tpu_custom_call.1} parent=0 // pred_check_branch
    %23 = sbr.rel (0) target = $region25
  $region24: #{tpu_custom_call.1} parent=0 // pred_region
    _
  $region25: #{tpu_custom_call.1} parent=0 // pred_fallthru
    _
  // Predicated region
  $region26: #{tpu_custom_call.1} parent=0 // pred_check
    _
  $region27: #{tpu_custom_call.1} parent=0 // pred_check_branch
    %25 = sbr.rel (0) target = $region29
  $region28: #{tpu_custom_call.1} parent=0 // pred_region
    _
  $region29: #{tpu_custom_call.1} parent=0 // pred_fallthru
    _
  %v27 = vld [vmem:[%s0] sm:$0xf]
  %v28 = vld [vmem:[%s0 + $0x4] sm:$0xf]
  %v29 = vld [vmem:[%s1] sm:$0xf]
  %v30 = vld [vmem:[%s2] sm:$0x1]
  %v32 = vlaneseq
  %v33 = vshrl.u32 %v32, 7
  %v34 = vsub.s32 0, %v33
  %v35 = vrot.slane %v30, %v34
  %v39 = vunpack.c.l.b16 %v27
  %v40 = vunpack.c.l.b16 %v28
  %v41 = vpack.c.b16 %v40, %v39
  %vm42 = vcmask 64512
  %v44 = vsel %vm42, %v41, 0
  %vm46 = vcmask 1043456
  %v48 = vsel %vm46, %v29, 0
  %50 = vmatprep.subr.bf16.mxu0 0
  %51 = vmatpush1.bf16.msra.mxu0 0
  %52 = vmatprep.subr.bf16.mxu0 0
  %53 = vmatpush1.bf16.msra.mxu0 0
  %54 = vmatprep.subr.bf16.mxu0 0
  %55 = vmatpush1.bf16.msra.mxu0 0
  %56 = vmatprep.subr.bf16.mxu0 0
  %57 = vmatpush1.bf16.msra.mxu0 0
  %58 = vmatprep.subr.bf16.mxu0 0
  %59 = vmatpush1.bf16.msra.mxu0 0
  %60 = vmatprep.subr.bf16.mxu0 0
  %61 = vmatpush1.bf16.msra.mxu0 0
  %62 = vmatprep.subr.bf16.mxu0 0
  %63 = vmatpush1.bf16.msra.mxu0 0
  %64 = vmatprep.subr.bf16.mxu0 0
  %65 = vmatpush1.bf16.msra.mxu0 %v48
  %66 = vmatprep.subr.bf16.mxu0 0
  %67 = vmatpush2.bf16.msra.mxu0 0
  %68 = vmatprep.subr.bf16.mxu0 0
  %69 = vmatpush2.bf16.msra.mxu0 0
  %70 = vmatprep.subr.bf16.mxu0 0
  %71 = vmatpush2.bf16.msra.mxu0 0
  %72 = vmatprep.subr.bf16.mxu0 0
  %73 = vmatpush2.bf16.msra.mxu0 0
  %74 = vmatprep.subr.bf16.mxu0 0
  %75 = vmatpush2.bf16.msra.mxu0 0
  %76 = vmatprep.subr.bf16.mxu0 0
  %77 = vmatpush2.bf16.msra.mxu0 0
  %78 = vmatprep.subr.bf16.mxu0 0
  %79 = vmatpush2.bf16.msra.mxu0 0
  %80 = vmatprep.subr.bf16.mxu0 0
  %81 = vmatpush2.bf16.msra.mxu0 0
  %82 = vmatprep.mubr.bf16.mxu0 0
  %83 = vmatmul.mubr.bf16.gmra.mxu0 %v44
  %v84 = vpop.f32.mrf.mxu0
  %v85 = vadd.f32 %v35, %v84
  %v86 = vpop.f32.mrf.mxu0
  %v87 = vpop.f32.mrf.mxu0
  %v88 = vadd.f32 %v35, %v87
  %v89 = vpop.f32.mrf.mxu0
  %90 = vdwg.mxu0
  %v91 = vmax.f32 %v85, 0.0
  %v92 = vmax.f32 %v88, 0.0
  %v93 = vpack.c.bf16 %v92, %v91
  %v94 = vld [vmem:[%s3] sm:$0xf]
  %v95 = vld [vmem:[%s3 + $0x4] sm:$0xf]
  %v96 = vld [vmem:[%s3 + $0x8] sm:$0xf]
  %v97 = vld [vmem:[%s3 + $0xc] sm:$0xf]
  %v98 = vld [vmem:[%s3 + $0x10] sm:$0xf]
  %v99 = vld [vmem:[%s3 + $0x14] sm:$0xf]
  %v100 = vld [vmem:[%s3 + $0x18] sm:$0xf]
  %v101 = vld [vmem:[%s3 + $0x1c] sm:$0xf]
  %v102 = vld [vmem:[%s3 + $0x20] sm:$0xf]
  %v103 = vld [vmem:[%s3 + $0x24] sm:$0xf]
  %v104 = vld [vmem:[%s3 + $0x28] sm:$0xf]
  %v105 = vld [vmem:[%s3 + $0x2c] sm:$0xf]
  %v106 = vld [vmem:[%s3 + $0x30] sm:$0xf]
  %v107 = vld [vmem:[%s3 + $0x34] sm:$0xf]
  %v108 = vld [vmem:[%s3 + $0x38] sm:$0xf]
  %v109 = vld [vmem:[%s3 + $0x3c] sm:$0xf]
  %v110 = vld [vmem:[%s4] sm:$0x1]
  %v112 = vlaneseq
  %v113 = vshrl.u32 %v112, 7
  %v114 = vsub.s32 0, %v113
  %v115 = vrot.slane %v110, %v114
  %v133 = vunpack.c.l.b16 %v94
  %v134 = vunpack.c.l.b16 %v95
  %v135 = vunpack.c.l.b16 %v96
  %v136 = vunpack.c.l.b16 %v97
  %v137 = vunpack.c.l.b16 %v98
  %v138 = vunpack.c.l.b16 %v99
  %v139 = vunpack.c.l.b16 %v100
  %v140 = vunpack.c.l.b16 %v101
  %v141 = vunpack.c.l.b16 %v102
  %v142 = vunpack.c.l.b16 %v103
  %v143 = vunpack.c.l.b16 %v104
  %v144 = vunpack.c.l.b16 %v105
  %v145 = vunpack.c.l.b16 %v106
  %v146 = vunpack.c.l.b16 %v107
  %v147 = vunpack.c.l.b16 %v108
  %v148 = vunpack.c.l.b16 %v109
  %v149 = vpack.c.b16 %v134, %v133
  %v150 = vpack.c.b16 %v136, %v135
  %v151 = vpack.c.b16 %v138, %v137
  %v152 = vpack.c.b16 %v140, %v139
  %v153 = vpack.c.b16 %v142, %v141
  %v154 = vpack.c.b16 %v144, %v143
  %v155 = vpack.c.b16 %v146, %v145
  %v156 = vpack.c.b16 %v148, %v147
  %165 = vmatprep.subr.bf16.mxu0 0
  %166 = vmatpush1.bf16.msra.mxu0 %v156
  %167 = vmatprep.subr.bf16.mxu0 0
  %168 = vmatpush1.bf16.msra.mxu0 %v155
  %169 = vmatprep.subr.bf16.mxu0 0
  %170 = vmatpush1.bf16.msra.mxu0 %v154
  %171 = vmatprep.subr.bf16.mxu0 0
  %172 = vmatpush1.bf16.msra.mxu0 %v153
  %173 = vmatprep.subr.bf16.mxu0 0
  %174 = vmatpush1.bf16.msra.mxu0 %v152
  %175 = vmatprep.subr.bf16.mxu0 0
  %176 = vmatpush1.bf16.msra.mxu0 %v151
  %177 = vmatprep.subr.bf16.mxu0 0
  %178 = vmatpush1.bf16.msra.mxu0 %v150
  %179 = vmatprep.subr.bf16.mxu0 0
  %180 = vmatpush1.bf16.msra.mxu0 %v149
  %181 = vmatprep.subr.bf16.mxu0 0
  %182 = vmatpush2.bf16.msra.mxu0 0
  %183 = vmatprep.subr.bf16.mxu0 0
  %184 = vmatpush2.bf16.msra.mxu0 0
  %185 = vmatprep.subr.bf16.mxu0 0
  %186 = vmatpush2.bf16.msra.mxu0 0
  %187 = vmatprep.subr.bf16.mxu0 0
  %188 = vmatpush2.bf16.msra.mxu0 0
  %189 = vmatprep.subr.bf16.mxu0 0
  %190 = vmatpush2.bf16.msra.mxu0 0
  %191 = vmatprep.subr.bf16.mxu0 0
  %192 = vmatpush2.bf16.msra.mxu0 0
  %193 = vmatprep.subr.bf16.mxu0 0
  %194 = vmatpush2.bf16.msra.mxu0 0
  %195 = vmatprep.subr.bf16.mxu0 0
  %196 = vmatpush2.bf16.msra.mxu0 0
  %197 = vmatprep.mubr.bf16.mxu0 0
  %198 = vmatmul.mubr.bf16.gmra.mxu0 %v93
  %v199 = vpop.f32.mrf.mxu0
  %v200 = vadd.f32 %v115, %v199
  %v201 = vpop.f32.mrf.mxu0
  %v202 = vpop.f32.mrf.mxu0
  %v203 = vadd.f32 %v115, %v202
  %v204 = vpop.f32.mrf.mxu0
  %205 = vdwg.mxu0
  %v206 = vmax.f32 %v200, 0.0
  %v207 = vmax.f32 %v203, 0.0
  %v208 = vpack.c.bf16 %v207, %v206
  %v209 = vld [vmem:[%s5] sm:$0xf]
  %v210 = vld [vmem:[%s5 + $0x4] sm:$0xf]
  %v211 = vld [vmem:[%s5 + $0x8] sm:$0xf]
  %v212 = vld [vmem:[%s5 + $0xc] sm:$0xf]
  %v213 = vld [vmem:[%s5 + $0x10] sm:$0xf]
  %v214 = vld [vmem:[%s5 + $0x14] sm:$0xf]
  %v215 = vld [vmem:[%s5 + $0x18] sm:$0xf]
  %v216 = vld [vmem:[%s5 + $0x1c] sm:$0xf]
  %v217 = vld [vmem:[%s5 + $0x20] sm:$0xf]
  %v218 = vld [vmem:[%s5 + $0x24] sm:$0xf]
  %v219 = vld [vmem:[%s5 + $0x28] sm:$0xf]
  %v220 = vld [vmem:[%s5 + $0x2c] sm:$0xf]
  %v221 = vld [vmem:[%s5 + $0x30] sm:$0xf]
  %v222 = vld [vmem:[%s5 + $0x34] sm:$0xf]
  %v223 = vld [vmem:[%s5 + $0x38] sm:$0xf]
  %v224 = vld [vmem:[%s5 + $0x3c] sm:$0xf]
  %v225 = vld [vmem:[%s6] sm:$0x1]
  %v227 = vlaneseq
  %v228 = vshrl.u32 %v227, 7
  %v229 = vsub.s32 0, %v228
  %v230 = vrot.slane %v225, %v229
  %v248 = vunpack.c.l.b16 %v209
  %v249 = vunpack.c.l.b16 %v210
  %v250 = vunpack.c.l.b16 %v211
  %v251 = vunpack.c.l.b16 %v212
  %v252 = vunpack.c.l.b16 %v213
  %v253 = vunpack.c.l.b16 %v214
  %v254 = vunpack.c.l.b16 %v215
  %v255 = vunpack.c.l.b16 %v216
  %v256 = vunpack.c.l.b16 %v217
  %v257 = vunpack.c.l.b16 %v218
  %v258 = vunpack.c.l.b16 %v219
  %v259 = vunpack.c.l.b16 %v220
  %v260 = vunpack.c.l.b16 %v221
  %v261 = vunpack.c.l.b16 %v222
  %v262 = vunpack.c.l.b16 %v223
  %v263 = vunpack.c.l.b16 %v224
  %v264 = vpack.c.b16 %v249, %v248
  %v265 = vpack.c.b16 %v251, %v250
  %v266 = vpack.c.b16 %v253, %v252
  %v267 = vpack.c.b16 %v255, %v254
  %v268 = vpack.c.b16 %v257, %v256
  %v269 = vpack.c.b16 %v259, %v258
  %v270 = vpack.c.b16 %v261, %v260
  %v271 = vpack.c.b16 %v263, %v262
  %280 = vmatprep.subr.bf16.mxu0 0
  %281 = vmatpush1.bf16.msra.mxu0 %v271
  %282 = vmatprep.subr.bf16.mxu0 0
  %283 = vmatpush1.bf16.msra.mxu0 %v270
  %284 = vmatprep.subr.bf16.mxu0 0
  %285 = vmatpush1.bf16.msra.mxu0 %v269
  %286 = vmatprep.subr.bf16.mxu0 0
  %287 = vmatpush1.bf16.msra.mxu0 %v268
  %288 = vmatprep.subr.bf16.mxu0 0
  %289 = vmatpush1.bf16.msra.mxu0 %v267
  %290 = vmatprep.subr.bf16.mxu0 0
  %291 = vmatpush1.bf16.msra.mxu0 %v266
  %292 = vmatprep.subr.bf16.mxu0 0
  %293 = vmatpush1.bf16.msra.mxu0 %v265
  %294 = vmatprep.subr.bf16.mxu0 0
  %295 = vmatpush1.bf16.msra.mxu0 %v264
  %296 = vmatprep.subr.bf16.mxu0 0
  %297 = vmatpush2.bf16.msra.mxu0 0
  %298 = vmatprep.subr.bf16.mxu0 0
  %299 = vmatpush2.bf16.msra.mxu0 0
  %300 = vmatprep.subr.bf16.mxu0 0
  %301 = vmatpush2.bf16.msra.mxu0 0
  %302 = vmatprep.subr.bf16.mxu0 0
  %303 = vmatpush2.bf16.msra.mxu0 0
  %304 = vmatprep.subr.bf16.mxu0 0
  %305 = vmatpush2.bf16.msra.mxu0 0
  %306 = vmatprep.subr.bf16.mxu0 0
  %307 = vmatpush2.bf16.msra.mxu0 0
  %308 = vmatprep.subr.bf16.mxu0 0
  %309 = vmatpush2.bf16.msra.mxu0 0
  %310 = vmatprep.subr.bf16.mxu0 0
  %311 = vmatpush2.bf16.msra.mxu0 0
  %312 = vmatprep.mubr.bf16.mxu0 0
  %313 = vmatmul.mubr.bf16.gmra.mxu0 %v208
  %v314 = vpop.f32.mrf.mxu0
  %v315 = vadd.f32 %v230, %v314
  %v316 = vpop.f32.mrf.mxu0
  %v317 = vpop.f32.mrf.mxu0
  %v318 = vadd.f32 %v230, %v317
  %v319 = vpop.f32.mrf.mxu0
  %320 = vdwg.mxu0
  %vm321 = vcmask 31744
  %322 = vst.msk [vmem:[%s7] sm:$0xff] %vm321, %v315
  %323 = vst.msk [vmem:[%s7 + $0x8] sm:$0xff] %vm321, %v318
  // Predicated region
  $region30: #{tpu_custom_call.1} parent=0 // pred_check
    _
  $region31: #{tpu_custom_call.1} parent=0 // pred_check_branch
    %325 = sbr.rel (0) target = $region33
  $region32: #{tpu_custom_call.1} parent=0 // pred_region
    _
  $region33: #{tpu_custom_call.1} parent=0 // pred_fallthru
    _
  // Predicated region
  $region34: #{tpu_custom_call.1} parent=0 // pred_check
    _
  $region35: #{tpu_custom_call.1} parent=0 // pred_check_branch
    %327 = sbr.rel (0) target = $region37
  $region36: #{tpu_custom_call.1} parent=0 // pred_region
    _
  $region37: #{tpu_custom_call.1} parent=0 // pred_fallthru
    _

</llo_original>
